<compile_context>
chip_gen: v6e
topology: v6e:2x2x1
jax: 0.10.0
libtpu: 0.0.40
codegen_flags: <defaults>
</compile_context>

<pallas_src>
import jax
import jax.numpy as jnp
from jax.experimental import pallas as pl
from jax.experimental.pallas import tpu as pltpu


def _se_kernel(x_ref, pool_ref, w1t_ref, w2t_ref, exp_ref, o_ref):
    # x_ref : (TB, C*L) lane-dense slab for the current batch tile
    # pool  : (C*L, C)  block-diagonal 1/L  -> per-channel mean via MXU
    # w1t   : (C, Cr)   W1 pre-transposed
    # w2t   : (Cr, C)   W2 pre-transposed
    # exp   : (C, C*L)  block-diagonal ones -> per-channel scale broadcast via MXU

    # ---- squeeze: mean over L as a matmul (rides the MXU, f32 accumulate)
    y = jnp.dot(x_ref[...], pool_ref[...],
                preferred_element_type=jnp.float32)                    # (TB, C)

    # ---- excitation MLP (no in-kernel transposes)
    h = jnp.maximum(
        jnp.dot(y, w1t_ref[...], preferred_element_type=jnp.float32), 0.0)   # (TB, Cr)
    s = jax.nn.sigmoid(
        jnp.dot(h, w2t_ref[...], preferred_element_type=jnp.float32))        # (TB, C)

    # ---- expand per-channel scales to (TB, C*L) via the MXU (no XLU reshape)
    s_full = jnp.dot(s, exp_ref[...], preferred_element_type=jnp.float32)    # (TB, C*L)

    # ---- scale: re-read x and do a lane-dense elementwise multiply + store
    o_ref[...] = (x_ref[...] * s_full).astype(o_ref.dtype)


def se_layer(x, w1, w2, *, batch_tile=None):
    """x: (B, C, L); w1: (C//r, C); w2: (C, C//r)  (PyTorch Linear layouts)."""
    B, C, L = x.shape
    Cr = w1.shape[0]
    CL = C * L
    tb = B if batch_tile is None else batch_tile
    assert B % tb == 0 and (tb == B or tb % 8 == 0), \
        "batch tile must be the full batch or a multiple of 8"

    # Lane-dense view of x: (B, C*L).  Contiguous reshape -> free wrapper-side.
    x_flat = x.reshape(B, CL)

    f32 = jnp.float32
    eye_c = jnp.eye(C, dtype=f32)
    pool_mat = jnp.repeat(eye_c, L, axis=0) * (1.0 / L)   # (C*L, C)
    expand_mat = jnp.repeat(eye_c, L, axis=1)             # (C, C*L)
    w1_t = w1.T.astype(f32)                               # (C, Cr)
    w2_t = w2.T.astype(f32)                               # (Cr, C)

    elt = jnp.dtype(x.dtype).itemsize
    cost = pl.CostEstimate(
        flops=(2 * B * CL * C            # pooling matmul
               + 2 * B * C * Cr * 2      # excitation MLP
               + 2 * B * C * CL          # scale expansion
               + B * CL),                # elementwise scale
        transcendentals=B * C,           # sigmoid
        bytes_accessed=2 * B * CL * elt + (2 * CL * C + 2 * C * Cr) * 4,
    )

    out_flat = pl.pallas_call(
        _se_kernel,
        out_shape=jax.ShapeDtypeStruct((B, CL), x.dtype),
        grid_spec=pltpu.PrefetchScalarGridSpec(
            num_scalar_prefetch=0,
            grid=(B // tb,),
            in_specs=[
                pl.BlockSpec((tb, CL), lambda b: (b, 0)),   # x slab (lane-dense)
                pl.BlockSpec((CL, C), lambda b: (0, 0)),    # pooling matrix (shared)
                pl.BlockSpec((C, Cr), lambda b: (0, 0)),    # W1^T (shared)
                pl.BlockSpec((Cr, C), lambda b: (0, 0)),    # W2^T (shared)
                pl.BlockSpec((C, CL), lambda b: (0, 0)),    # expansion matrix (shared)
            ],
            out_specs=pl.BlockSpec((tb, CL), lambda b: (b, 0)),
        ),
        compiler_params=pltpu.CompilerParams(
            dimension_semantics=("parallel",),
        ),
        cost_estimate=cost,
    )(x_flat, pool_mat, w1_t, w2_t, expand_mat)

    return out_flat.reshape(B, C, L)


def se_layer_ref(x, w1, w2):
    """Pure-JAX reference mirroring the PyTorch forward."""
    y = jnp.mean(x, axis=-1)                      # (B, C)
    h = jnp.maximum(y @ w1.T, 0.0)                # (B, C//r)
    s = jax.nn.sigmoid(h @ w2.T)                  # (B, C)
    return x * s[:, :, None]


if __name__ == "__main__":
    # SELayer(channel=32, reduction=16)  ->  hidden = 2
    B, C, L, reduction = 2, 32, 16, 16
    Cr = C // reduction

    key = jax.random.PRNGKey(0)
    kx, k1, k2 = jax.random.split(key, 3)

    x = jax.random.normal(kx, (B, C, L), dtype=jnp.float32)
    # Deterministic parameter init (PyTorch Linear weight shape: (out, in))
    w1 = jax.random.normal(k1, (Cr, C), dtype=jnp.float32) * (1.0 / jnp.sqrt(C))
    w2 = jax.random.normal(k2, (C, Cr), dtype=jnp.float32) * (1.0 / jnp.sqrt(Cr))

    out = jax.block_until_ready(se_layer(x, w1, w2))
    ref = se_layer_ref(x, w1, w2)

    assert out.shape == (B, C, L)
    assert jnp.allclose(out, ref, atol=1e-5, rtol=1e-5), "mismatch vs reference"

    print("KERNEL_OK")
</pallas_src>

<mosaic_0001>
module attributes {stable_mosaic.version = 11 : i64} {
  func.func @_se_kernel(%arg0: i32, %arg1: memref<2x512xf32, #tpu.memory_space<vmem>>, %arg2: memref<512x32xf32, #tpu.memory_space<vmem>>, %arg3: memref<32x2xf32, #tpu.memory_space<vmem>>, %arg4: memref<2x32xf32, #tpu.memory_space<vmem>>, %arg5: memref<32x512xf32, #tpu.memory_space<vmem>>, %arg6: memref<2x512xf32, #tpu.memory_space<vmem>>) attributes {dimension_semantics = [#tpu.dimension_semantics<parallel>], iteration_bounds = array<i64: 1>, scalar_prefetch = 0 : i64, scratch_operands = 0 : i64, tpu.core_type = #tpu.core_type<tc>, window_params = [{transform_indices = @transform_0, window_bounds = array<i64: 2, 512>}, {pipeline_mode = #tpu.pipeline_mode<synchronous>, transform_indices = @transform_1, window_bounds = array<i64: 512, 32>}, {pipeline_mode = #tpu.pipeline_mode<synchronous>, transform_indices = @transform_2, window_bounds = array<i64: 32, 2>}, {pipeline_mode = #tpu.pipeline_mode<synchronous>, transform_indices = @transform_3, window_bounds = array<i64: 2, 32>}, {pipeline_mode = #tpu.pipeline_mode<synchronous>, transform_indices = @transform_4, window_bounds = array<i64: 32, 512>}, {transform_indices = @transform_5, window_bounds = array<i64: 2, 512>}]} {
    %c0 = arith.constant 0 : index
    %c0_0 = arith.constant 0 : index
    %0 = vector.load %arg1[%c0, %c0_0] : memref<2x512xf32, #tpu.memory_space<vmem>>, vector<2x512xf32>
    %c0_1 = arith.constant 0 : index
    %c0_2 = arith.constant 0 : index
    %1 = vector.load %arg2[%c0_1, %c0_2] : memref<512x32xf32, #tpu.memory_space<vmem>>, vector<512x32xf32>
    %cst = arith.constant dense<0.000000e+00> : vector<2x32xf32>
    %2 = tpu.matmul %0, %1, %cst {dimension_numbers = #tpu.dot_dimension_numbers<[1], [0], [0], [1], [0, 0, 1, 1], [], []>} : vector<2x512xf32>, vector<512x32xf32>, vector<2x32xf32> -> vector<2x32xf32>
    %c0_3 = arith.constant 0 : index
    %c0_4 = arith.constant 0 : index
    %3 = vector.load %arg3[%c0_3, %c0_4] : memref<32x2xf32, #tpu.memory_space<vmem>>, vector<32x2xf32>
    %cst_5 = arith.constant dense<0.000000e+00> : vector<2x2xf32>
    %4 = tpu.matmul %2, %3, %cst_5 {dimension_numbers = #tpu.dot_dimension_numbers<[1], [0], [0], [1], [0, 0, 1, 1], [], []>} : vector<2x32xf32>, vector<32x2xf32>, vector<2x2xf32> -> vector<2x2xf32>
    %cst_6 = arith.constant 0.000000e+00 : f32
    %5 = vector.broadcast %cst_6 : f32 to vector<2x2xf32>
    %6 = arith.maximumf %4, %5 : vector<2x2xf32>
    %c0_7 = arith.constant 0 : index
    %c0_8 = arith.constant 0 : index
    %7 = vector.load %arg4[%c0_7, %c0_8] : memref<2x32xf32, #tpu.memory_space<vmem>>, vector<2x32xf32>
    %cst_9 = arith.constant dense<0.000000e+00> : vector<2x32xf32>
    %8 = tpu.matmul %6, %7, %cst_9 {dimension_numbers = #tpu.dot_dimension_numbers<[1], [0], [0], [1], [0, 0, 1, 1], [], []>} : vector<2x2xf32>, vector<2x32xf32>, vector<2x32xf32> -> vector<2x32xf32>
    %9 = arith.negf %8 : vector<2x32xf32>
    %10 = math.exp %9 : vector<2x32xf32>
    %cst_10 = arith.constant 1.000000e+00 : f32
    %11 = vector.broadcast %cst_10 : f32 to vector<2x32xf32>
    %12 = arith.addf %11, %10 : vector<2x32xf32>
    %13 = arith.divf %11, %12 : vector<2x32xf32>
    %c0_11 = arith.constant 0 : index
    %c0_12 = arith.constant 0 : index
    %14 = vector.load %arg5[%c0_11, %c0_12] : memref<32x512xf32, #tpu.memory_space<vmem>>, vector<32x512xf32>
    %cst_13 = arith.constant dense<0.000000e+00> : vector<2x512xf32>
    %15 = tpu.matmul %13, %14, %cst_13 {dimension_numbers = #tpu.dot_dimension_numbers<[1], [0], [0], [1], [0, 0, 1, 1], [], []>} : vector<2x32xf32>, vector<32x512xf32>, vector<2x512xf32> -> vector<2x512xf32>
    %c0_14 = arith.constant 0 : index
    %c0_15 = arith.constant 0 : index
    %16 = vector.load %arg1[%c0_14, %c0_15] : memref<2x512xf32, #tpu.memory_space<vmem>>, vector<2x512xf32>
    %17 = arith.mulf %16, %15 : vector<2x512xf32>
    %c0_16 = arith.constant 0 : index
    %c0_17 = arith.constant 0 : index
    %18 = vector.load %arg6[%c0_16, %c0_17] : memref<2x512xf32, #tpu.memory_space<vmem>>, vector<2x512xf32>
    tpu.vector_store %arg6[%c0_16, %c0_17], %17 {strides = array<i32>} : memref<2x512xf32, #tpu.memory_space<vmem>>, vector<2x512xf32>,
    return
  }
  func.func @transform_0(%arg0: i32) -> (i32, i32) {
    %c0_i32 = arith.constant 0 : i32
    %c0_i32_0 = arith.constant 0 : i32
    return %arg0, %c0_i32 : i32, i32
  }
  func.func @transform_1(%arg0: i32) -> (i32, i32) {
    %c0_i32 = arith.constant 0 : i32
    %c0_i32_0 = arith.constant 0 : i32
    %c0_i32_1 = arith.constant 0 : i32
    return %c0_i32, %c0_i32_0 : i32, i32
  }
  func.func @transform_2(%arg0: i32) -> (i32, i32) {
    %c0_i32 = arith.constant 0 : i32
    %c0_i32_0 = arith.constant 0 : i32
    %c0_i32_1 = arith.constant 0 : i32
    return %c0_i32, %c0_i32_0 : i32, i32
  }
  func.func @transform_3(%arg0: i32) -> (i32, i32) {
    %c0_i32 = arith.constant 0 : i32
    %c0_i32_0 = arith.constant 0 : i32
    %c0_i32_1 = arith.constant 0 : i32
    return %c0_i32, %c0_i32_0 : i32, i32
  }
  func.func @transform_4(%arg0: i32) -> (i32, i32) {
    %c0_i32 = arith.constant 0 : i32
    %c0_i32_0 = arith.constant 0 : i32
    %c0_i32_1 = arith.constant 0 : i32
    return %c0_i32, %c0_i32_0 : i32, i32
  }
  func.func @transform_5(%arg0: i32) -> (i32, i32) {
    %c0_i32 = arith.constant 0 : i32
    %c0_i32_0 = arith.constant 0 : i32
    return %arg0, %c0_i32 : i32, i32
  }
}

</mosaic_0001>

<llo_original>
// kernel: tpu_custom_call.1
$region0: #{tpu_custom_call.1}
  #allocation0 [shape = 'u32[]', space=smem, size = 0x4, offset = 0x4, fixed_abs, tag = 'smem constant byte address 0x4 - core index']
  #allocation1 [shape = 'u32[144,128]{1,0:T(1,128)}', space=vmem, size = 0x12000, scoped, tag = 'internal scratch']
  %s0 = inlined_call_operand.vmem [shape: f32[2,512], index: 0, kind: input, shape index: {}]
  %s1 = inlined_call_operand.vmem [shape: f32[512,32], index: 1, kind: input, shape index: {}]
  %s2 = inlined_call_operand.vmem [shape: f32[32,2], index: 2, kind: input, shape index: {}]
  %s3 = inlined_call_operand.vmem [shape: f32[2,32], index: 3, kind: input, shape index: {}]
  %s4 = inlined_call_operand.vmem [shape: f32[32,512], index: 4, kind: input, shape index: {}]
  %s5 = inlined_call_operand.hbm [shape: f32[2,512], index: 5, kind: output, shape index: {}]
  %s6 = sld [smem:[#allocation0]]
  $region30: #{tpu_custom_call.1} parent=0
    _
  %s8 = ssub.s32 1, %s6
  %s9 = scalar_select 0, %s8, %s6
  $region1: #{tpu_custom_call.1} parent=0
    #allocation2 [shape = 'u8[4096]{0}', space=vmem, size = 0x1000, scoped, tag = 'output window, operand 0, single buffered']
    #allocation3 [shape = 's32[1]{0}', space=sflag, size = 0x4, scoped, tag = 'scoped memory for tpu_custom_call.1']
    %10 = vsyncpa [#allocation3], 0
    // Predicated region
    $region2: #{tpu_custom_call.1} parent=1 // pred_check
      _
    $region3: #{tpu_custom_call.1} parent=1 // pred_check_branch
      %12 = sbr.rel (0) target = $region5
    $region4: #{tpu_custom_call.1} parent=1 // pred_region
      _
    $region5: #{tpu_custom_call.1} parent=1 // pred_fallthru
      _
    // Predicated region
    $region6: #{tpu_custom_call.1} parent=1 // pred_check
      _
    $region7: #{tpu_custom_call.1} parent=1 // pred_check_branch
      %14 = sbr.rel (0) target = $region9
    $region8: #{tpu_custom_call.1} parent=1 // pred_region
      _
    $region9: #{tpu_custom_call.1} parent=1 // pred_fallthru
      _
    // Predicated region
    $region10: #{tpu_custom_call.1} parent=1 // pred_check
      _
    $region11: #{tpu_custom_call.1} parent=1 // pred_check_branch
      %16 = sbr.rel (0) target = $region13
    $region12: #{tpu_custom_call.1} parent=1 // pred_region
      _
    $region13: #{tpu_custom_call.1} parent=1 // pred_fallthru
      _
    // Predicated region
    $region14: #{tpu_custom_call.1} parent=1 // pred_check
      _
    $region15: #{tpu_custom_call.1} parent=1 // pred_check_branch
      %18 = sbr.rel (0) target = $region17
    $region16: #{tpu_custom_call.1} parent=1 // pred_region
      _
    $region17: #{tpu_custom_call.1} parent=1 // pred_fallthru
      _
    // Predicated region
    $region18: #{tpu_custom_call.1} parent=1 // pred_check
      _
    $region19: #{tpu_custom_call.1} parent=1 // pred_check_branch
      %20 = sbr.rel (0) target = $region21
    $region20: #{tpu_custom_call.1} parent=1 // pred_region
      _
    $region21: #{tpu_custom_call.1} parent=1 // pred_fallthru
      _
    %v21 = vld [vmem:[%s0] sm:$0xff]
    %v22 = vld [vmem:[%s1] sm:$0xff]
    %v23 = vld [vmem:[%s1 + $0x8] sm:$0xff]
    %v24 = vld [vmem:[%s1 + $0x10] sm:$0xff]
    %v25 = vld [vmem:[%s1 + $0x18] sm:$0xff]
    %v26 = vld [vmem:[%s1 + $0x20] sm:$0xff]
    %v27 = vld [vmem:[%s1 + $0x28] sm:$0xff]
    %v28 = vld [vmem:[%s1 + $0x30] sm:$0xff]
    %v29 = vld [vmem:[%s1 + $0x38] sm:$0xff]
    %v30 = vld [vmem:[%s1 + $0x40] sm:$0xff]
    %v31 = vld [vmem:[%s1 + $0x48] sm:$0xff]
    %v32 = vld [vmem:[%s1 + $0x50] sm:$0xff]
    %v33 = vld [vmem:[%s1 + $0x58] sm:$0xff]
    %v34 = vld [vmem:[%s1 + $0x60] sm:$0xff]
    %v35 = vld [vmem:[%s1 + $0x68] sm:$0xff]
    %v36 = vld [vmem:[%s1 + $0x70] sm:$0xff]
    %v37 = vld [vmem:[%s1 + $0x78] sm:$0xff]
    %v38 = vld [vmem:[%s1 + $0x80] sm:$0xff]
    %v39 = vld [vmem:[%s1 + $0x88] sm:$0xff]
    %v40 = vld [vmem:[%s1 + $0x90] sm:$0xff]
    %v41 = vld [vmem:[%s1 + $0x98] sm:$0xff]
    %v42 = vld [vmem:[%s1 + $0xa0] sm:$0xff]
    %v43 = vld [vmem:[%s1 + $0xa8] sm:$0xff]
    %v44 = vld [vmem:[%s1 + $0xb0] sm:$0xff]
    %v45 = vld [vmem:[%s1 + $0xb8] sm:$0xff]
    %v46 = vld [vmem:[%s1 + $0xc0] sm:$0xff]
    %v47 = vld [vmem:[%s1 + $0xc8] sm:$0xff]
    %v48 = vld [vmem:[%s1 + $0xd0] sm:$0xff]
    %v49 = vld [vmem:[%s1 + $0xd8] sm:$0xff]
    %v50 = vld [vmem:[%s1 + $0xe0] sm:$0xff]
    %v51 = vld [vmem:[%s1 + $0xe8] sm:$0xff]
    %v52 = vld [vmem:[%s1 + $0xf0] sm:$0xff]
    %v53 = vld [vmem:[%s1 + $0xf8] sm:$0xff]
    %v54 = vld [vmem:[%s1 + $0x100] sm:$0xff]
    %v55 = vld [vmem:[%s1 + $0x108] sm:$0xff]
    %v56 = vld [vmem:[%s1 + $0x110] sm:$0xff]
    %v57 = vld [vmem:[%s1 + $0x118] sm:$0xff]
    %v58 = vld [vmem:[%s1 + $0x120] sm:$0xff]
    %v59 = vld [vmem:[%s1 + $0x128] sm:$0xff]
    %v60 = vld [vmem:[%s1 + $0x130] sm:$0xff]
    %v61 = vld [vmem:[%s1 + $0x138] sm:$0xff]
    %v62 = vld [vmem:[%s1 + $0x140] sm:$0xff]
    %v63 = vld [vmem:[%s1 + $0x148] sm:$0xff]
    %v64 = vld [vmem:[%s1 + $0x150] sm:$0xff]
    %v65 = vld [vmem:[%s1 + $0x158] sm:$0xff]
    %v66 = vld [vmem:[%s1 + $0x160] sm:$0xff]
    %v67 = vld [vmem:[%s1 + $0x168] sm:$0xff]
    %v68 = vld [vmem:[%s1 + $0x170] sm:$0xff]
    %v69 = vld [vmem:[%s1 + $0x178] sm:$0xff]
    %v70 = vld [vmem:[%s1 + $0x180] sm:$0xff]
    %v71 = vld [vmem:[%s1 + $0x188] sm:$0xff]
    %v72 = vld [vmem:[%s1 + $0x190] sm:$0xff]
    %v73 = vld [vmem:[%s1 + $0x198] sm:$0xff]
    %v74 = vld [vmem:[%s1 + $0x1a0] sm:$0xff]
    %v75 = vld [vmem:[%s1 + $0x1a8] sm:$0xff]
    %v76 = vld [vmem:[%s1 + $0x1b0] sm:$0xff]
    %v77 = vld [vmem:[%s1 + $0x1b8] sm:$0xff]
    %v78 = vld [vmem:[%s1 + $0x1c0] sm:$0xff]
    %v79 = vld [vmem:[%s1 + $0x1c8] sm:$0xff]
    %v80 = vld [vmem:[%s1 + $0x1d0] sm:$0xff]
    %v81 = vld [vmem:[%s1 + $0x1d8] sm:$0xff]
    %v82 = vld [vmem:[%s1 + $0x1e0] sm:$0xff]
    %v83 = vld [vmem:[%s1 + $0x1e8] sm:$0xff]
    %v84 = vld [vmem:[%s1 + $0x1f0] sm:$0xff]
    %v85 = vld [vmem:[%s1 + $0x1f8] sm:$0xff]
    %v87 = vcombine.high %v21, %v21
    %v89 = vunpack.c.l.s4 1983009808
    %v90 = vunpack.c.0.s8 %v89
    %v91 = vlaneseq
    %v92 = vshrl.u32 %v91, 7
    %v93 = vsub.s32 %v90, %v92
    %v94 = vrot.slane %v21, %v93
    %v96 = vunpack.c.l.s4 1983009808
    %v97 = vunpack.c.0.s8 %v96
    %v98 = vlaneseq
    %v99 = vshrl.u32 %v98, 7
    %v100 = vsub.s32 %v97, %v99
    %v101 = vrot.slane %v87, %v100
    %v102 = vcombine.high %v94, %v94
    %v103 = vcombine.high %v101, %v101
    %108 = vmatprep.subr.mxu0 0.0
    %109 = vmatpush1.msra.mxu0 %v37
    %110 = vmatprep.subr.mxu0 0.0
    %111 = vmatpush1.msra.mxu0 %v36
    %112 = vmatprep.subr.mxu0 0.0
    %113 = vmatpush1.msra.mxu0 %v35
    %114 = vmatprep.subr.mxu0 0.0
    %115 = vmatpush1.msra.mxu0 %v34
    %116 = vmatprep.subr.mxu0 0.0
    %117 = vmatpush1.msra.mxu0 %v33
    %118 = vmatprep.subr.mxu0 0.0
    %119 = vmatpush1.msra.mxu0 %v32
    %120 = vmatprep.subr.mxu0 0.0
    %121 = vmatpush1.msra.mxu0 %v31
    %122 = vmatprep.subr.mxu0 0.0
    %123 = vmatpush1.msra.mxu0 %v30
    %124 = vmatprep.subr.mxu0 0.0
    %125 = vmatpush1.msra.mxu0 %v29
    %126 = vmatprep.subr.mxu0 0.0
    %127 = vmatpush1.msra.mxu0 %v28
    %128 = vmatprep.subr.mxu0 0.0
    %129 = vmatpush1.msra.mxu0 %v27
    %130 = vmatprep.subr.mxu0 0.0
    %131 = vmatpush1.msra.mxu0 %v26
    %132 = vmatprep.subr.mxu0 0.0
    %133 = vmatpush1.msra.mxu0 %v25
    %134 = vmatprep.subr.mxu0 0.0
    %135 = vmatpush1.msra.mxu0 %v24
    %136 = vmatprep.subr.mxu0 0.0
    %137 = vmatpush1.msra.mxu0 %v23
    %138 = vmatprep.subr.mxu0 0.0
    %139 = vmatpush1.msra.mxu0 %v22
    %140 = vmatprep.subr.mxu0 0.0
    %141 = vmatpush2.msra.mxu0 %v53
    %142 = vmatprep.subr.mxu0 0.0
    %143 = vmatpush2.msra.mxu0 %v52
    %144 = vmatprep.subr.mxu0 0.0
    %145 = vmatpush2.msra.mxu0 %v51
    %146 = vmatprep.subr.mxu0 0.0
    %147 = vmatpush2.msra.mxu0 %v50
    %148 = vmatprep.subr.mxu0 0.0
    %149 = vmatpush2.msra.mxu0 %v49
    %150 = vmatprep.subr.mxu0 0.0
    %151 = vmatpush2.msra.mxu0 %v48
    %152 = vmatprep.subr.mxu0 0.0
    %153 = vmatpush2.msra.mxu0 %v47
    %154 = vmatprep.subr.mxu0 0.0
    %155 = vmatpush2.msra.mxu0 %v46
    %156 = vmatprep.subr.mxu0 0.0
    %157 = vmatpush2.msra.mxu0 %v45
    %158 = vmatprep.subr.mxu0 0.0
    %159 = vmatpush2.msra.mxu0 %v44
    %160 = vmatprep.subr.mxu0 0.0
    %161 = vmatpush2.msra.mxu0 %v43
    %162 = vmatprep.subr.mxu0 0.0
    %163 = vmatpush2.msra.mxu0 %v42
    %164 = vmatprep.subr.mxu0 0.0
    %165 = vmatpush2.msra.mxu0 %v41
    %166 = vmatprep.subr.mxu0 0.0
    %167 = vmatpush2.msra.mxu0 %v40
    %168 = vmatprep.subr.mxu0 0.0
    %169 = vmatpush2.msra.mxu0 %v39
    %170 = vmatprep.subr.mxu0 0.0
    %171 = vmatpush2.msra.mxu0 %v38
    %172 = vmatprep.mubr.f32.mxu0 %v102
    %173 = vmatmul.mubr.f32.gmra.mxu0 %v94
    %v174 = vpop.f32.mrf.mxu0
    %v175 = vadd.f32 0.0, %v174
    %v176 = vpop.f32.mrf.mxu0
    %177 = vdwg.mxu0
    %178 = vmatprep.subr.mxu0 0.0
    %179 = vmatpush1.msra.mxu0 %v69
    %180 = vmatprep.subr.mxu0 0.0
    %181 = vmatpush1.msra.mxu0 %v68
    %182 = vmatprep.subr.mxu0 0.0
    %183 = vmatpush1.msra.mxu0 %v67
    %184 = vmatprep.subr.mxu0 0.0
    %185 = vmatpush1.msra.mxu0 %v66
    %186 = vmatprep.subr.mxu0 0.0
    %187 = vmatpush1.msra.mxu0 %v65
    %188 = vmatprep.subr.mxu0 0.0
    %189 = vmatpush1.msra.mxu0 %v64
    %190 = vmatprep.subr.mxu0 0.0
    %191 = vmatpush1.msra.mxu0 %v63
    %192 = vmatprep.subr.mxu0 0.0
    %193 = vmatpush1.msra.mxu0 %v62
    %194 = vmatprep.subr.mxu0 0.0
    %195 = vmatpush1.msra.mxu0 %v61
    %196 = vmatprep.subr.mxu0 0.0
    %197 = vmatpush1.msra.mxu0 %v60
    %198 = vmatprep.subr.mxu0 0.0
    %199 = vmatpush1.msra.mxu0 %v59
    %200 = vmatprep.subr.mxu0 0.0
    %201 = vmatpush1.msra.mxu0 %v58
    %202 = vmatprep.subr.mxu0 0.0
    %203 = vmatpush1.msra.mxu0 %v57
    %204 = vmatprep.subr.mxu0 0.0
    %205 = vmatpush1.msra.mxu0 %v56
    %206 = vmatprep.subr.mxu0 0.0
    %207 = vmatpush1.msra.mxu0 %v55
    %208 = vmatprep.subr.mxu0 0.0
    %209 = vmatpush1.msra.mxu0 %v54
    %210 = vmatprep.subr.mxu0 0.0
    %211 = vmatpush2.msra.mxu0 %v85
    %212 = vmatprep.subr.mxu0 0.0
    %213 = vmatpush2.msra.mxu0 %v84
    %214 = vmatprep.subr.mxu0 0.0
    %215 = vmatpush2.msra.mxu0 %v83
    %216 = vmatprep.subr.mxu0 0.0
    %217 = vmatpush2.msra.mxu0 %v82
    %218 = vmatprep.subr.mxu0 0.0
    %219 = vmatpush2.msra.mxu0 %v81
    %220 = vmatprep.subr.mxu0 0.0
    %221 = vmatpush2.msra.mxu0 %v80
    %222 = vmatprep.subr.mxu0 0.0
    %223 = vmatpush2.msra.mxu0 %v79
    %224 = vmatprep.subr.mxu0 0.0
    %225 = vmatpush2.msra.mxu0 %v78
    %226 = vmatprep.subr.mxu0 0.0
    %227 = vmatpush2.msra.mxu0 %v77
    %228 = vmatprep.subr.mxu0 0.0
    %229 = vmatpush2.msra.mxu0 %v76
    %230 = vmatprep.subr.mxu0 0.0
    %231 = vmatpush2.msra.mxu0 %v75
    %232 = vmatprep.subr.mxu0 0.0
    %233 = vmatpush2.msra.mxu0 %v74
    %234 = vmatprep.subr.mxu0 0.0
    %235 = vmatpush2.msra.mxu0 %v73
    %236 = vmatprep.subr.mxu0 0.0
    %237 = vmatpush2.msra.mxu0 %v72
    %238 = vmatprep.subr.mxu0 0.0
    %239 = vmatpush2.msra.mxu0 %v71
    %240 = vmatprep.subr.mxu0 0.0
    %241 = vmatpush2.msra.mxu0 %v70
    %242 = vmatprep.mubr.f32.mxu0 %v103
    %243 = vmatmul.mubr.f32.gmra.mxu0 %v101
    %v244 = vpop.f32.mrf.mxu0
    %v245 = vadd.f32 %v175, %v244
    %v246 = vpop.f32.mrf.mxu0
    %247 = vdwg.mxu0
    %v248 = vld [vmem:[%s2] sm:$0xff]
    %v249 = vld [vmem:[%s2 + $0x8] sm:$0xff]
    %v250 = vld [vmem:[%s2 + $0x10] sm:$0xff]
    %v251 = vld [vmem:[%s2 + $0x18] sm:$0xff]
    %vm252 = vcmask 261120
    %v254 = vsel %vm252, %v245, 0
    %256 = vmatprep.subr.mxu0 0.0
    %257 = vmatpush1.msra.mxu0 0.0
    %258 = vmatprep.subr.mxu0 0.0
    %259 = vmatpush1.msra.mxu0 0.0
    %260 = vmatprep.subr.mxu0 0.0
    %261 = vmatpush1.msra.mxu0 0.0
    %262 = vmatprep.subr.mxu0 0.0
    %263 = vmatpush1.msra.mxu0 0.0
    %264 = vmatprep.subr.mxu0 0.0
    %265 = vmatpush1.msra.mxu0 0.0
    %266 = vmatprep.subr.mxu0 0.0
    %267 = vmatpush1.msra.mxu0 0.0
    %268 = vmatprep.subr.mxu0 0.0
    %269 = vmatpush1.msra.mxu0 0.0
    %270 = vmatprep.subr.mxu0 0.0
    %271 = vmatpush1.msra.mxu0 0.0
    %272 = vmatprep.subr.mxu0 0.0
    %273 = vmatpush1.msra.mxu0 0.0
    %274 = vmatprep.subr.mxu0 0.0
    %275 = vmatpush1.msra.mxu0 0.0
    %276 = vmatprep.subr.mxu0 0.0
    %277 = vmatpush1.msra.mxu0 0.0
    %278 = vmatprep.subr.mxu0 0.0
    %279 = vmatpush1.msra.mxu0 0.0
    %280 = vmatprep.subr.mxu0 0.0
    %281 = vmatpush1.msra.mxu0 %v251
    %282 = vmatprep.subr.mxu0 0.0
    %283 = vmatpush1.msra.mxu0 %v250
    %284 = vmatprep.subr.mxu0 0.0
    %285 = vmatpush1.msra.mxu0 %v249
    %286 = vmatprep.subr.mxu0 0.0
    %287 = vmatpush1.msra.mxu0 %v248
    %288 = vmatprep.subr.mxu0 0.0
    %289 = vmatpush2.msra.mxu0 0.0
    %290 = vmatprep.subr.mxu0 0.0
    %291 = vmatpush2.msra.mxu0 0.0
    %292 = vmatprep.subr.mxu0 0.0
    %293 = vmatpush2.msra.mxu0 0.0
    %294 = vmatprep.subr.mxu0 0.0
    %295 = vmatpush2.msra.mxu0 0.0
    %296 = vmatprep.subr.mxu0 0.0
    %297 = vmatpush2.msra.mxu0 0.0
    %298 = vmatprep.subr.mxu0 0.0
    %299 = vmatpush2.msra.mxu0 0.0
    %300 = vmatprep.subr.mxu0 0.0
    %301 = vmatpush2.msra.mxu0 0.0
    %302 = vmatprep.subr.mxu0 0.0
    %303 = vmatpush2.msra.mxu0 0.0
    %304 = vmatprep.subr.mxu0 0.0
    %305 = vmatpush2.msra.mxu0 0.0
    %306 = vmatprep.subr.mxu0 0.0
    %307 = vmatpush2.msra.mxu0 0.0
    %308 = vmatprep.subr.mxu0 0.0
    %309 = vmatpush2.msra.mxu0 0.0
    %310 = vmatprep.subr.mxu0 0.0
    %311 = vmatpush2.msra.mxu0 0.0
    %312 = vmatprep.subr.mxu0 0.0
    %313 = vmatpush2.msra.mxu0 0.0
    %314 = vmatprep.subr.mxu0 0.0
    %315 = vmatpush2.msra.mxu0 0.0
    %316 = vmatprep.subr.mxu0 0.0
    %317 = vmatpush2.msra.mxu0 0.0
    %318 = vmatprep.subr.mxu0 0.0
    %319 = vmatpush2.msra.mxu0 0.0
    %320 = vmatprep.mubr.f32.mxu0 0.0
    %321 = vmatmul.mubr.f32.gmra.mxu0 %v254
    %v322 = vpop.f32.mrf.mxu0
    %v323 = vadd.f32 0.0, %v322
    %v324 = vpop.f32.mrf.mxu0
    %325 = vdwg.mxu0
    %v326 = vmax.f32 %v323, 0.0
    %v327 = vld [vmem:[%s3] sm:$0x3]
    %vm328 = vcmask 15360
    %v330 = vsel %vm328, %v326, 0
    %vm332 = vcmask 1041408
    %v334 = vsel %vm332, %v327, 0
    %336 = vmatprep.subr.mxu0 0.0
    %337 = vmatpush1.msra.mxu0 0.0
    %338 = vmatprep.subr.mxu0 0.0
    %339 = vmatpush1.msra.mxu0 0.0
    %340 = vmatprep.subr.mxu0 0.0
    %341 = vmatpush1.msra.mxu0 0.0
    %342 = vmatprep.subr.mxu0 0.0
    %343 = vmatpush1.msra.mxu0 0.0
    %344 = vmatprep.subr.mxu0 0.0
    %345 = vmatpush1.msra.mxu0 0.0
    %346 = vmatprep.subr.mxu0 0.0
    %347 = vmatpush1.msra.mxu0 0.0
    %348 = vmatprep.subr.mxu0 0.0
    %349 = vmatpush1.msra.mxu0 0.0
    %350 = vmatprep.subr.mxu0 0.0
    %351 = vmatpush1.msra.mxu0 0.0
    %352 = vmatprep.subr.mxu0 0.0
    %353 = vmatpush1.msra.mxu0 0.0
    %354 = vmatprep.subr.mxu0 0.0
    %355 = vmatpush1.msra.mxu0 0.0
    %356 = vmatprep.subr.mxu0 0.0
    %357 = vmatpush1.msra.mxu0 0.0
    %358 = vmatprep.subr.mxu0 0.0
    %359 = vmatpush1.msra.mxu0 0.0
    %360 = vmatprep.subr.mxu0 0.0
    %361 = vmatpush1.msra.mxu0 0.0
    %362 = vmatprep.subr.mxu0 0.0
    %363 = vmatpush1.msra.mxu0 0.0
    %364 = vmatprep.subr.mxu0 0.0
    %365 = vmatpush1.msra.mxu0 0.0
    %366 = vmatprep.subr.mxu0 0.0
    %367 = vmatpush1.msra.mxu0 %v334
    %368 = vmatprep.subr.mxu0 0.0
    %369 = vmatpush2.msra.mxu0 0.0
    %370 = vmatprep.subr.mxu0 0.0
    %371 = vmatpush2.msra.mxu0 0.0
    %372 = vmatprep.subr.mxu0 0.0
    %373 = vmatpush2.msra.mxu0 0.0
    %374 = vmatprep.subr.mxu0 0.0
    %375 = vmatpush2.msra.mxu0 0.0
    %376 = vmatprep.subr.mxu0 0.0
    %377 = vmatpush2.msra.mxu0 0.0
    %378 = vmatprep.subr.mxu0 0.0
    %379 = vmatpush2.msra.mxu0 0.0
    %380 = vmatprep.subr.mxu0 0.0
    %381 = vmatpush2.msra.mxu0 0.0
    %382 = vmatprep.subr.mxu0 0.0
    %383 = vmatpush2.msra.mxu0 0.0
    %384 = vmatprep.subr.mxu0 0.0
    %385 = vmatpush2.msra.mxu0 0.0
    %386 = vmatprep.subr.mxu0 0.0
    %387 = vmatpush2.msra.mxu0 0.0
    %388 = vmatprep.subr.mxu0 0.0
    %389 = vmatpush2.msra.mxu0 0.0
    %390 = vmatprep.subr.mxu0 0.0
    %391 = vmatpush2.msra.mxu0 0.0
    %392 = vmatprep.subr.mxu0 0.0
    %393 = vmatpush2.msra.mxu0 0.0
    %394 = vmatprep.subr.mxu0 0.0
    %395 = vmatpush2.msra.mxu0 0.0
    %396 = vmatprep.subr.mxu0 0.0
    %397 = vmatpush2.msra.mxu0 0.0
    %398 = vmatprep.subr.mxu0 0.0
    %399 = vmatpush2.msra.mxu0 0.0
    %400 = vmatprep.mubr.f32.mxu0 0.0
    %401 = vmatmul.mubr.f32.gmra.mxu0 %v330
    %v402 = vpop.f32.mrf.mxu0
    %v403 = vadd.f32 0.0, %v402
    %v404 = vpop.f32.mrf.mxu0
    %405 = vdwg.mxu0
    %v406 = vxor.u32 %v403, 2147483648
    %v407 = vmul.f32 %v406, 1.442695
    %v408 = vpow.pop %v407
    %v409 = vadd.f32 %v408, 1.0
    %v410 = vrcp.pop %v409
    %v411 = vmul.f32 1.0, %v410
    %v412 = vld [vmem:[%s4] sm:$0xff]
    %v413 = vld [vmem:[%s4 + $0x8] sm:$0xff]
    %v414 = vld [vmem:[%s4 + $0x10] sm:$0xff]
    %v415 = vld [vmem:[%s4 + $0x18] sm:$0xff]
    %v416 = vld [vmem:[%s4 + $0x20] sm:$0xff]
    %v417 = vld [vmem:[%s4 + $0x28] sm:$0xff]
    %v418 = vld [vmem:[%s4 + $0x30] sm:$0xff]
    %v419 = vld [vmem:[%s4 + $0x38] sm:$0xff]
    %v420 = vld [vmem:[%s4 + $0x40] sm:$0xff]
    %v421 = vld [vmem:[%s4 + $0x48] sm:$0xff]
    %v422 = vld [vmem:[%s4 + $0x50] sm:$0xff]
    %v423 = vld [vmem:[%s4 + $0x58] sm:$0xff]
    %v424 = vld [vmem:[%s4 + $0x60] sm:$0xff]
    %v425 = vld [vmem:[%s4 + $0x68] sm:$0xff]
    %v426 = vld [vmem:[%s4 + $0x70] sm:$0xff]
    %v427 = vld [vmem:[%s4 + $0x78] sm:$0xff]
    %v429 = vsel %vm252, %v411, 0
    %431 = vmatprep.subr.mxu0 0.0
    %432 = vmatpush1.msra.mxu0 0.0
    %433 = vmatprep.subr.mxu0 0.0
    %434 = vmatpush1.msra.mxu0 0.0
    %435 = vmatprep.subr.mxu0 0.0
    %436 = vmatpush1.msra.mxu0 0.0
    %437 = vmatprep.subr.mxu0 0.0
    %438 = vmatpush1.msra.mxu0 0.0
    %439 = vmatprep.subr.mxu0 0.0
    %440 = vmatpush1.msra.mxu0 0.0
    %441 = vmatprep.subr.mxu0 0.0
    %442 = vmatpush1.msra.mxu0 0.0
    %443 = vmatprep.subr.mxu0 0.0
    %444 = vmatpush1.msra.mxu0 0.0
    %445 = vmatprep.subr.mxu0 0.0
    %446 = vmatpush1.msra.mxu0 0.0
    %447 = vmatprep.subr.mxu0 0.0
    %448 = vmatpush1.msra.mxu0 0.0
    %449 = vmatprep.subr.mxu0 0.0
    %450 = vmatpush1.msra.mxu0 0.0
    %451 = vmatprep.subr.mxu0 0.0
    %452 = vmatpush1.msra.mxu0 0.0
    %453 = vmatprep.subr.mxu0 0.0
    %454 = vmatpush1.msra.mxu0 0.0
    %455 = vmatprep.subr.mxu0 %v425
    %456 = vmatpush1.msra.mxu0 %v424
    %457 = vmatprep.subr.mxu0 %v421
    %458 = vmatpush1.msra.mxu0 %v420
    %459 = vmatprep.subr.mxu0 %v417
    %460 = vmatpush1.msra.mxu0 %v416
    %461 = vmatprep.subr.mxu0 %v413
    %462 = vmatpush1.msra.mxu0 %v412
    %463 = vmatprep.subr.mxu0 0.0
    %464 = vmatpush2.msra.mxu0 0.0
    %465 = vmatprep.subr.mxu0 0.0
    %466 = vmatpush2.msra.mxu0 0.0
    %467 = vmatprep.subr.mxu0 0.0
    %468 = vmatpush2.msra.mxu0 0.0
    %469 = vmatprep.subr.mxu0 0.0
    %470 = vmatpush2.msra.mxu0 0.0
    %471 = vmatprep.subr.mxu0 0.0
    %472 = vmatpush2.msra.mxu0 0.0
    %473 = vmatprep.subr.mxu0 0.0
    %474 = vmatpush2.msra.mxu0 0.0
    %475 = vmatprep.subr.mxu0 0.0
    %476 = vmatpush2.msra.mxu0 0.0
    %477 = vmatprep.subr.mxu0 0.0
    %478 = vmatpush2.msra.mxu0 0.0
    %479 = vmatprep.subr.mxu0 0.0
    %480 = vmatpush2.msra.mxu0 0.0
    %481 = vmatprep.subr.mxu0 0.0
    %482 = vmatpush2.msra.mxu0 0.0
    %483 = vmatprep.subr.mxu0 0.0
    %484 = vmatpush2.msra.mxu0 0.0
    %485 = vmatprep.subr.mxu0 0.0
    %486 = vmatpush2.msra.mxu0 0.0
    %487 = vmatprep.subr.mxu0 0.0
    %488 = vmatpush2.msra.mxu0 0.0
    %489 = vmatprep.subr.mxu0 0.0
    %490 = vmatpush2.msra.mxu0 0.0
    %491 = vmatprep.subr.mxu0 0.0
    %492 = vmatpush2.msra.mxu0 0.0
    %493 = vmatprep.subr.mxu0 0.0
    %494 = vmatpush2.msra.mxu0 0.0
    %495 = vmatprep.mubr.f32.mxu0 0.0
    %496 = vmatmul.mubr.f32.gmra.mxu0 %v429
    %v497 = vpop.f32.mrf.mxu0
    %v498 = vadd.f32 0.0, %v497
    %v499 = vpop.f32.mrf.mxu0
    %v500 = vadd.f32 0.0, %v499
    %501 = vdwg.mxu0
    %502 = vmatprep.subr.mxu0 0.0
    %503 = vmatpush1.msra.mxu0 0.0
    %504 = vmatprep.subr.mxu0 0.0
    %505 = vmatpush1.msra.mxu0 0.0
    %506 = vmatprep.subr.mxu0 0.0
    %507 = vmatpush1.msra.mxu0 0.0
    %508 = vmatprep.subr.mxu0 0.0
    %509 = vmatpush1.msra.mxu0 0.0
    %510 = vmatprep.subr.mxu0 0.0
    %511 = vmatpush1.msra.mxu0 0.0
    %512 = vmatprep.subr.mxu0 0.0
    %513 = vmatpush1.msra.mxu0 0.0
    %514 = vmatprep.subr.mxu0 0.0
    %515 = vmatpush1.msra.mxu0 0.0
    %516 = vmatprep.subr.mxu0 0.0
    %517 = vmatpush1.msra.mxu0 0.0
    %518 = vmatprep.subr.mxu0 0.0
    %519 = vmatpush1.msra.mxu0 0.0
    %520 = vmatprep.subr.mxu0 0.0
    %521 = vmatpush1.msra.mxu0 0.0
    %522 = vmatprep.subr.mxu0 0.0
    %523 = vmatpush1.msra.mxu0 0.0
    %524 = vmatprep.subr.mxu0 0.0
    %525 = vmatpush1.msra.mxu0 0.0
    %526 = vmatprep.subr.mxu0 %v427
    %527 = vmatpush1.msra.mxu0 %v426
    %528 = vmatprep.subr.mxu0 %v423
    %529 = vmatpush1.msra.mxu0 %v422
    %530 = vmatprep.subr.mxu0 %v419
    %531 = vmatpush1.msra.mxu0 %v418
    %532 = vmatprep.subr.mxu0 %v415
    %533 = vmatpush1.msra.mxu0 %v414
    %534 = vmatprep.subr.mxu0 0.0
    %535 = vmatpush2.msra.mxu0 0.0
    %536 = vmatprep.subr.mxu0 0.0
    %537 = vmatpush2.msra.mxu0 0.0
    %538 = vmatprep.subr.mxu0 0.0
    %539 = vmatpush2.msra.mxu0 0.0
    %540 = vmatprep.subr.mxu0 0.0
    %541 = vmatpush2.msra.mxu0 0.0
    %542 = vmatprep.subr.mxu0 0.0
    %543 = vmatpush2.msra.mxu0 0.0
    %544 = vmatprep.subr.mxu0 0.0
    %545 = vmatpush2.msra.mxu0 0.0
    %546 = vmatprep.subr.mxu0 0.0
    %547 = vmatpush2.msra.mxu0 0.0
    %548 = vmatprep.subr.mxu0 0.0
    %549 = vmatpush2.msra.mxu0 0.0
    %550 = vmatprep.subr.mxu0 0.0
    %551 = vmatpush2.msra.mxu0 0.0
    %552 = vmatprep.subr.mxu0 0.0
    %553 = vmatpush2.msra.mxu0 0.0
    %554 = vmatprep.subr.mxu0 0.0
    %555 = vmatpush2.msra.mxu0 0.0
    %556 = vmatprep.subr.mxu0 0.0
    %557 = vmatpush2.msra.mxu0 0.0
    %558 = vmatprep.subr.mxu0 0.0
    %559 = vmatpush2.msra.mxu0 0.0
    %560 = vmatprep.subr.mxu0 0.0
    %561 = vmatpush2.msra.mxu0 0.0
    %562 = vmatprep.subr.mxu0 0.0
    %563 = vmatpush2.msra.mxu0 0.0
    %564 = vmatprep.subr.mxu0 0.0
    %565 = vmatpush2.msra.mxu0 0.0
    %566 = vmatprep.mubr.f32.mxu0 0.0
    %567 = vmatmul.mubr.f32.gmra.mxu0 %v429
    %v568 = vpop.f32.mrf.mxu0
    %v569 = vadd.f32 0.0, %v568
    %v570 = vpop.f32.mrf.mxu0
    %v571 = vadd.f32 0.0, %v570
    %572 = vdwg.mxu0
    %v577 = vcombine.low %v498, %v500
    %v578 = vcombine.low %v569, %v571
    %v580 = vunpack.c.l.s4 1983009808
    %v581 = vunpack.c.0.s8 %v580
    %v582 = vlaneseq
    %v583 = vshrl.u32 %v582, 7
    %v584 = vsub.s32 %v581, %v583
    %v585 = vrot.slane %v577, %v584
    %v587 = vunpack.c.l.s4 1983009808
    %v588 = vunpack.c.0.s8 %v587
    %v589 = vlaneseq
    %v590 = vshrl.u32 %v589, 7
    %v591 = vsub.s32 %v588, %v590
    %v592 = vrot.slane %v578, %v591
    %v593 = vcombine.low %v585, %v592
    %v595 = vmul.f32 %v21, %v593
    %596 = vst [vmem:[#allocation2] sm:$0xff] %v595
    // Predicated region
    $region22: #{tpu_custom_call.1} parent=1 // pred_check
      _
    $region23: #{tpu_custom_call.1} parent=1 // pred_check_branch
      %598 = sbr.rel (0) target = $region25
    $region24: #{tpu_custom_call.1} parent=1 // pred_region
      %s600 = ssub.s32 128, 128
      %601 = vsyncadd [#allocation3], %s600
      %s603 = sshll.u32 [#allocation2], 4
      %s604 = int_to_ptr.vmem [resolvable:$true] %s603
      %606 = dma.vmem_to_hbm [thread:$0]  %s604, 128, %s5, [#allocation3]
    $region25: #{tpu_custom_call.1} parent=1 // pred_fallthru
      _
    // Predicated region
    $region26: #{tpu_custom_call.1} parent=1 // pred_check
      _
    $region27: #{tpu_custom_call.1} parent=1 // pred_check_branch
      %608 = sbr.rel (0) target = $region29
    $region28: #{tpu_custom_call.1} parent=1 // pred_region
      %609 = dma.done [#allocation3], 128
    $region29: #{tpu_custom_call.1} parent=1 // pred_fallthru
      _
    %610 = vsyncpa [#allocation3], 1

</llo_original>
